<compile_context>
chip_gen: v7x
topology: tpu7x:2x2x1
jax: 0.10.0
libtpu: 0.0.40
codegen_flags: <defaults>
</compile_context>

<pallas_src>
import functools
import math

import jax
import jax.numpy as jnp
from jax.experimental import pallas as pl
from jax.experimental.pallas import tpu as pltpu


def _build_pe_table(d_model: int, max_len: int = 5000) -> jnp.ndarray:
    """Sinusoidal table, same math as the PyTorch __init__.  (max_len, d_model) f32.

    Built once at module init (like register_buffer); the (max_len, 1, d_model)
    unsqueeze/transpose in PyTorch is pure layout glue -- the batch broadcast
    happens inside the kernel.
    """
    position = jnp.arange(0, max_len, dtype=jnp.float32)[:, None]            # (L, 1)
    div_term = jnp.exp(
        jnp.arange(0, d_model, 2, dtype=jnp.float32)
        * (-math.log(10000.0) / d_model)
    )                                                                        # (ceil(D/2),)
    angles = position * div_term                                             # (L, ceil(D/2))
    pe = jnp.zeros((max_len, d_model), dtype=jnp.float32)
    pe = pe.at[:, 0::2].set(jnp.sin(angles))
    # Guard odd d_model: cos fills floor(D/2) columns (matches PyTorch for even D).
    pe = pe.at[:, 1::2].set(jnp.cos(angles[:, : d_model // 2]))
    return pe


def _pe_add_kernel(x_ref, pe_ref, o_ref, *, batch: int):
    # x_ref : (TS, B*D) tile of the flattened activations, in x.dtype
    # pe_ref: (TS, D)   tile of the float32 pe table
    pe = pe_ref[...]
    if batch > 1:
        # Replicate pe across the batch along lanes.  jnp.tile is the supported
        # lane-repeat path; this is pure VPU/XLU filler in a mem-bound kernel
        # and keeps pe's HBM traffic at 1/B of x's.
        pe = jnp.tile(pe, (1, batch))                       # (TS, B*D) float32
    o_ref[...] = (x_ref[...].astype(jnp.float32) + pe).astype(o_ref.dtype)


def _target_tile_bytes() -> int:
    """Per-generation x-tile size target (see header comment)."""
    try:
        kind = jax.devices()[0].device_kind.lower()
    except Exception:  # pragma: no cover - e.g. interpret mode / no devices yet
        return 2 << 20
    if "v5" in kind:
        return 1 << 20      # v5e: slower HBM + 16 MiB scoped-VMEM default
    if "v7" in kind:
        return 4 << 20      # v7x: amortize 0.35 us/step against 3.2 TB/s
    return 2 << 20          # v6e and anything else


def _pick_seq_tile(S: int, row_bytes: int, target_bytes: int) -> int:
    """Sequence-tile TS so each (TS, B*D) x block is ~target_bytes.

    Keeps TS a multiple of 8 whenever TS < S (sublane-aligned leading dim of
    the 2-D blocks); splits a single-tile sequence in two when S >= 16 so the
    'parallel' grid axis has >=2 steps for v7x's two TensorCores.
    """
    rows = max(1, target_bytes // max(1, row_bytes))
    rows = min(rows, S)
    if rows == S and S >= 16:
        rows = -(-S // 2)  # ceil(S / 2): give megacore something to split
    if rows < S:
        if rows >= 8:
            rows -= rows % 8          # sublane-aligned partial blocks
        else:
            rows = min(8, S)          # never emit a <8-row partial block
    return max(1, rows)


def positional_encoding(x: jnp.ndarray, pe_table: jnp.ndarray) -> jnp.ndarray:
    """x: (S, B, D); pe_table: (max_len, D) float32.  Returns x + pe[:S] (broadcast over B)."""
    S, B, D = x.shape
    max_len, d_model = pe_table.shape
    assert d_model == D and S <= max_len

    BD = B * D
    # Free, row-major-contiguous view: lanes become B*D (lane-dense stores when
    # B*D is a multiple of 128), leading dim is the tiled sequence axis.
    x2d = x.reshape(S, BD)

    itemsize = jnp.dtype(x.dtype).itemsize
    TS = _pick_seq_tile(S, BD * itemsize, _target_tile_bytes())
    grid = (pl.cdiv(S, TS),)

    # Pass the full cached table (no per-call slice/cast/reshape) whenever the
    # block shape is layout-legal against it; only tiny/ragged S needs a slice.
    pe_in = pe_table if TS % 8 == 0 else pe_table[:S]

    out2d = pl.pallas_call(
        functools.partial(_pe_add_kernel, batch=B),
        out_shape=jax.ShapeDtypeStruct((S, BD), x.dtype),
        grid_spec=pl.GridSpec(
            grid=grid,
            in_specs=[
                pl.BlockSpec((TS, BD), lambda i: (i, 0)),   # x tile
                pl.BlockSpec((TS, D), lambda i: (i, 0)),    # pe tile (batch-invariant, f32)
            ],
            out_specs=pl.BlockSpec((TS, BD), lambda i: (i, 0)),
        ),
        # Pure elementwise update: output may reuse x's HBM buffer (a real
        # saving only when the caller donates x; otherwise XLA copies).
        input_output_aliases={0: 0},
        compiler_params=pltpu.CompilerParams(
            dimension_semantics=("parallel",),  # independent S-tiles -> megacore-shardable
        ),
    )(x2d, pe_in)

    return out2d.reshape(S, B, D)


if __name__ == "__main__":
    # Small shapes implied by the forward: x is (seq, batch, d_model).
    # d_model chosen so batch*d_model = 128 -> lane-dense stores even at toy size.
    S, B, D = 8, 2, 64
    MAX_LEN = 5000

    key = jax.random.PRNGKey(0)
    x = jax.random.normal(key, (S, B, D), dtype=jnp.float32)

    pe_table = _build_pe_table(D, MAX_LEN)  # built once, like register_buffer

    # Reference in plain JAX (same math as the PyTorch forward).
    ref = x + pe_table[:S][:, None, :]

    out = positional_encoding(x, pe_table)
    out = jax.block_until_ready(out)

    assert out.shape == (S, B, D)
    assert jnp.allclose(out, ref, atol=1e-6, rtol=1e-6)

    print("KERNEL_OK")
</pallas_src>

<mosaic_0001>
module attributes {stable_mosaic.version = 11 : i64} {
  func.func @_pe_add_kernel(%arg0: i32, %arg1: memref<8x128xf32, #tpu.memory_space<vmem>>, %arg2: memref<8x64xf32, #tpu.memory_space<vmem>>, %arg3: memref<8x128xf32, #tpu.memory_space<vmem>>) attributes {dimension_semantics = [#tpu.dimension_semantics<parallel>], iteration_bounds = array<i64: 1>, scalar_prefetch = 0 : i64, scratch_operands = 0 : i64, tpu.core_type = #tpu.core_type<tc>, window_params = [{transform_indices = @transform_0, window_bounds = array<i64: 8, 128>}, {transform_indices = @transform_1, window_bounds = array<i64: 8, 64>}, {transform_indices = @transform_2, window_bounds = array<i64: 8, 128>}]} {
    %c0 = arith.constant 0 : index
    %c0_0 = arith.constant 0 : index
    %0 = vector.load %arg2[%c0, %c0_0] : memref<8x64xf32, #tpu.memory_space<vmem>>, vector<8x64xf32>
    %1 = tpu.concatenate %0, %0 in 1 : vector<8x64xf32>, vector<8x64xf32> -> vector<8x128xf32>
    %c0_1 = arith.constant 0 : index
    %c0_2 = arith.constant 0 : index
    %2 = vector.load %arg1[%c0_1, %c0_2] : memref<8x128xf32, #tpu.memory_space<vmem>>, vector<8x128xf32>
    %3 = arith.addf %2, %1 : vector<8x128xf32>
    %c0_3 = arith.constant 0 : index
    %c0_4 = arith.constant 0 : index
    %4 = vector.load %arg3[%c0_3, %c0_4] : memref<8x128xf32, #tpu.memory_space<vmem>>, vector<8x128xf32>
    tpu.vector_store %arg3[%c0_3, %c0_4], %3 {strides = array<i32>} : memref<8x128xf32, #tpu.memory_space<vmem>>, vector<8x128xf32>,
    return
  }
  func.func @transform_0(%arg0: i32) -> (i32, i32) {
    %c0_i32 = arith.constant 0 : i32
    %c0_i32_0 = arith.constant 0 : i32
    return %arg0, %c0_i32 : i32, i32
  }
  func.func @transform_1(%arg0: i32) -> (i32, i32) {
    %c0_i32 = arith.constant 0 : i32
    %c0_i32_0 = arith.constant 0 : i32
    return %arg0, %c0_i32 : i32, i32
  }
  func.func @transform_2(%arg0: i32) -> (i32, i32) {
    %c0_i32 = arith.constant 0 : i32
    %c0_i32_0 = arith.constant 0 : i32
    return %arg0, %c0_i32 : i32, i32
  }
}

</mosaic_0001>

<llo_original>
// kernel: tpu_custom_call.1
$region0: #{tpu_custom_call.1}
  #allocation0 [shape = 'u32[]', space=smem, size = 0x4, offset = 0x4, fixed_abs, tag = 'smem constant byte address 0x4 - core index']
  #allocation1 [shape = 'u32[144,128]{1,0:T(1,128)}', space=vmem, size = 0x12000, scoped, tag = 'internal scratch']
  %s0 = inlined_call_operand.hbm [shape: f32[8,128], index: 0, kind: input, shape index: {}, may-alias: {0,2}]
  %s1 = inlined_call_operand.vmem [shape: f32[5000,64], index: 1, kind: input, shape index: {}]
  %s2 = inlined_call_operand.hbm [shape: f32[8,128], index: 2, kind: output, shape index: {}, may-alias: {0,2}]
  %s3 = sld [smem:[#allocation0]]
  $region22: #{tpu_custom_call.1} parent=0
    _
  %s5 = ssub.s32 1, %s3
  %s6 = scalar_select 0, %s5, %s3
  $region1: #{tpu_custom_call.1} parent=0
    #allocation2 [shape = 'u8[4096]{0}', space=vmem, size = 0x1000, scoped, tag = 'input window, operand 0, single buffered']
    #allocation3 [shape = 's32[1]{0}', space=sflag, size = 0x4, scoped, tag = 'scoped memory for tpu_custom_call.1']
    #allocation4 [shape = 's32[1]{0}', space=sflag, size = 0x4, scoped, tag = 'scoped memory for tpu_custom_call.1']
    #allocation5 [shape = 'u8[4096]{0}', space=vmem, size = 0x1000, scoped, tag = 'output window, operand 0, single buffered']
    %7 = vsyncpa [#allocation3], 0
    %8 = vsyncpa [#allocation4], 0
    // Predicated region
    $region2: #{tpu_custom_call.1} parent=1 // pred_check
      _
    $region3: #{tpu_custom_call.1} parent=1 // pred_check_branch
      %10 = sbr.rel (0) target = $region5
    $region4: #{tpu_custom_call.1} parent=1 // pred_region
      %s12 = ssub.s32 128, 128
      %13 = vsyncadd [#allocation3], %s12
      %s15 = sshll.u32 [#allocation2], 4
      %s16 = int_to_ptr.vmem [resolvable:$true] %s15
      %18 = dma.hbm_to_vmem [thread:$0]  %s0, 128, %s16, [#allocation3]
    $region5: #{tpu_custom_call.1} parent=1 // pred_fallthru
      _
    // Predicated region
    $region6: #{tpu_custom_call.1} parent=1 // pred_check
      _
    $region7: #{tpu_custom_call.1} parent=1 // pred_check_branch
      %20 = sbr.rel (0) target = $region9
    $region8: #{tpu_custom_call.1} parent=1 // pred_region
      _
    $region9: #{tpu_custom_call.1} parent=1 // pred_fallthru
      _
    // Predicated region
    $region10: #{tpu_custom_call.1} parent=1 // pred_check
      _
    $region11: #{tpu_custom_call.1} parent=1 // pred_check_branch
      %22 = sbr.rel (0) target = $region13
    $region12: #{tpu_custom_call.1} parent=1 // pred_region
      %23 = dma.done [#allocation3], 128
    $region13: #{tpu_custom_call.1} parent=1 // pred_fallthru
      _
    %v24 = vld [vmem:[%s1] sm:$0xff]
    %26 = vrot.lane.b32.xlu0 %v24, 64
    %v27 = vpop.permute.xlu0 %26
    %vm29 = vcmask 523264
    %v30 = vsel %vm29, %v24, %v27
    %v31 = vld [vmem:[#allocation2] sm:$0xff]
    %v32 = vadd.f32 %v31, %v30
    %33 = vst [vmem:[#allocation5] sm:$0xff] %v32
    // Predicated region
    $region14: #{tpu_custom_call.1} parent=1 // pred_check
      _
    $region15: #{tpu_custom_call.1} parent=1 // pred_check_branch
      %35 = sbr.rel (0) target = $region17
    $region16: #{tpu_custom_call.1} parent=1 // pred_region
      %s37 = ssub.s32 128, 128
      %38 = vsyncadd [#allocation4], %s37
      %s40 = sshll.u32 [#allocation5], 4
      %s41 = int_to_ptr.vmem [resolvable:$true] %s40
      %43 = dma.vmem_to_hbm [thread:$0]  %s41, 128, %s2, [#allocation4]
    $region17: #{tpu_custom_call.1} parent=1 // pred_fallthru
      _
    // Predicated region
    $region18: #{tpu_custom_call.1} parent=1 // pred_check
      _
    $region19: #{tpu_custom_call.1} parent=1 // pred_check_branch
      %45 = sbr.rel (0) target = $region21
    $region20: #{tpu_custom_call.1} parent=1 // pred_region
      %46 = dma.done [#allocation4], 128
    $region21: #{tpu_custom_call.1} parent=1 // pred_fallthru
      _
    %47 = vsyncpa [#allocation3], 1
    %48 = vsyncpa [#allocation4], 1

</llo_original>
